<compile_context>
chip_gen: v7x
topology: tpu7x:2x2x1
jax: 0.10.0
libtpu: 0.0.40
codegen_flags: <defaults>
</compile_context>

<pallas_src>
import functools
import math
import random

import numpy as np

import jax
import jax.numpy as jnp
from jax.experimental import pallas as pl
from jax.experimental.pallas import tpu as pltpu


def _round_up(x: int, m: int) -> int:
    return ((x + m - 1) // m) * m


def _draw_scale(scale_range, seed: int) -> float:
    """Host-side random scale (mirrors random.uniform(*self.scale), deterministic via seed)."""
    return random.Random(seed).uniform(*scale_range)


def _nearest_src_indices(in_size: int, out_size: int, scale: float) -> np.ndarray:
    """PyTorch upsample_nearest source index: min(floor(dst * (1/scale)), in-1), float32 math."""
    inv = np.float32(1.0) / np.float32(scale)
    idx = np.floor(np.arange(out_size, dtype=np.float32) * inv).astype(np.int64)
    return np.minimum(idx, in_size - 1)


def _one_hot(rows: int, cols: int, row_ids, col_ids) -> jax.Array:
    """Vectorized one-hot selector; padded rows/cols stay zero. bf16 is exact for 0/1."""
    m = np.zeros((rows, cols), dtype=np.float32)
    m[row_ids, col_ids] = 1.0
    return jnp.asarray(m, dtype=jnp.bfloat16)


def _resize_kernel(num_channels, r_ref, ct_ref, x_ref, o_ref):
    # r_ref : (TH, H)      bf16 one-hot row selector for this output-row tile
    # ct_ref: (W, WP)      bf16 one-hot column selector (transposed), lane-padded
    # x_ref : (C, H, W)    input (block index constant across grid -> stays resident)
    # o_ref : (C, TH, WP)  lane-dense output tile
    r = r_ref[...]
    ct = ct_ref[...]
    for c in range(num_channels):  # static unroll; no per-channel grid-step overhead
        rows = jnp.dot(r, x_ref[c], preferred_element_type=jnp.float32)          # (TH, W)
        o_ref[c] = jnp.dot(rows, ct, preferred_element_type=jnp.float32).astype(o_ref.dtype)


def random_resize(x: jax.Array, scale_range=(0.5, 2.0), seed: int = 0) -> jax.Array:
    """Pallas implementation of RandomResize.forward (mode='nearest').

    x: (C, H, W) array.  Returns the resized (C, floor(H*s), floor(W*s)) array.
    """
    scale = _draw_scale(scale_range, seed)

    C, H, W = map(int, x.shape)
    H_out = max(1, int(math.floor(H * scale)))   # guard degenerate scales
    W_out = max(1, int(math.floor(W * scale)))

    row_idx = _nearest_src_indices(H, H_out, scale)
    col_idx = _nearest_src_indices(W, W_out, scale)

    # --- tiling -------------------------------------------------------------
    h8 = _round_up(H_out, 8)
    if h8 <= 8:
        th = 8
    else:
        th = min(256, _round_up((h8 + 1) // 2, 8))   # >= 2 grid steps when possible (v7x 2 TCs)
    h_out_pad = _round_up(H_out, th)
    grid = h_out_pad // th
    wp = _round_up(W_out, 128)                       # lane-dense (unmasked) output stores

    # --- one-hot selectors (numpy, vectorized; padding stays zero) ----------
    r_sel = _one_hot(h_out_pad, H, np.arange(H_out), row_idx)    # (H_out_pad, H)
    ct_sel = _one_hot(W, wp, col_idx, np.arange(W_out))          # (W, WP)

    out_padded = pl.pallas_call(
        functools.partial(_resize_kernel, C),
        out_shape=jax.ShapeDtypeStruct((C, h_out_pad, wp), x.dtype),
        grid_spec=pltpu.PrefetchScalarGridSpec(
            num_scalar_prefetch=0,
            grid=(grid,),
            in_specs=[
                pl.BlockSpec((th, H), lambda i: (i, 0)),         # row selector tile
                pl.BlockSpec((W, wp), lambda i: (0, 0)),         # column selector
                pl.BlockSpec((C, H, W), lambda i: (0, 0, 0)),    # whole input, resident
            ],
            out_specs=pl.BlockSpec((C, th, wp), lambda i: (0, i, 0)),
        ),
        compiler_params=pltpu.CompilerParams(
            dimension_semantics=("parallel",),
            vmem_limit_bytes=32 * 1024 * 1024,
        ),
    )(r_sel, ct_sel, x)

    # strip row/lane padding (zero rows/cols written by the padded selectors)
    return out_padded[:, :H_out, :W_out]


if __name__ == "__main__":
    key = jax.random.PRNGKey(0)
    C, H, W = 4, 16, 16
    x = jax.random.normal(key, (C, H, W), dtype=jnp.float32)
    # Use bf16-representable f32 values so the one-hot selection matmul is bit-exact
    # irrespective of the MXU's f32 pass count (nearest-neighbor = pure gather).
    x = x.astype(jnp.bfloat16).astype(jnp.float32)

    seed = 0
    out = jax.block_until_ready(random_resize(x, (0.5, 2.0), seed=seed))

    # pure-JAX reference: direct nearest-neighbor gather with the same deterministic scale
    scale = _draw_scale((0.5, 2.0), seed)
    H_out = max(1, int(math.floor(H * scale)))
    W_out = max(1, int(math.floor(W * scale)))
    row_idx = _nearest_src_indices(H, H_out, scale)
    col_idx = _nearest_src_indices(W, W_out, scale)
    ref = x[:, jnp.asarray(row_idx), :][:, :, jnp.asarray(col_idx)]

    assert out.shape == (C, H_out, W_out), (out.shape, (C, H_out, W_out))
    assert bool(jnp.allclose(out, ref, rtol=1e-5, atol=1e-6)), "mismatch vs nearest-neighbor reference"
    print("KERNEL_OK")
</pallas_src>

<mosaic_0001>
module attributes {stable_mosaic.version = 11 : i64} {
  func.func @_resize_kernel(%arg0: i32, %arg1: memref<16x16xbf16, #tpu.memory_space<vmem>>, %arg2: memref<16x128xbf16, #tpu.memory_space<vmem>>, %arg3: memref<4x16x16xf32, #tpu.memory_space<vmem>>, %arg4: memref<4x16x128xf32, #tpu.memory_space<vmem>>) attributes {dimension_semantics = [#tpu.dimension_semantics<parallel>], iteration_bounds = array<i64: 2>, scalar_prefetch = 0 : i64, scratch_operands = 0 : i64, tpu.core_type = #tpu.core_type<tc>, window_params = [{transform_indices = @transform_0, window_bounds = array<i64: 16, 16>}, {pipeline_mode = #tpu.pipeline_mode<synchronous>, transform_indices = @transform_1, window_bounds = array<i64: 16, 128>}, {pipeline_mode = #tpu.pipeline_mode<synchronous>, transform_indices = @transform_2, window_bounds = array<i64: 4, 16, 16>}, {transform_indices = @transform_3, window_bounds = array<i64: 4, 16, 128>}]} {
    %c0 = arith.constant 0 : index
    %c0_0 = arith.constant 0 : index
    %0 = vector.load %arg1[%c0, %c0_0] : memref<16x16xbf16, #tpu.memory_space<vmem>>, vector<16x16xbf16>
    %c0_1 = arith.constant 0 : index
    %c0_2 = arith.constant 0 : index
    %1 = vector.load %arg2[%c0_1, %c0_2] : memref<16x128xbf16, #tpu.memory_space<vmem>>, vector<16x128xbf16>
    %c0_3 = arith.constant 0 : index
    %c0_4 = arith.constant 0 : index
    %c0_5 = arith.constant 0 : index
    %2 = vector.load %arg3[%c0_3, %c0_4, %c0_5] : memref<4x16x16xf32, #tpu.memory_space<vmem>>, vector<1x16x16xf32>
    %3 = vector.shape_cast %2 : vector<1x16x16xf32> to vector<16x16xf32>
    %cst = arith.constant dense<0.000000e+00> : vector<16x16xf32>
    %4 = tpu.matmul %0, %3, %cst {dimension_numbers = #tpu.dot_dimension_numbers<[1], [0], [0], [1], [0, 0, 1, 1], [], []>} : vector<16x16xbf16>, vector<16x16xf32>, vector<16x16xf32> -> vector<16x16xf32>
    %cst_6 = arith.constant dense<0.000000e+00> : vector<16x128xf32>
    %5 = tpu.matmul %4, %1, %cst_6 {dimension_numbers = #tpu.dot_dimension_numbers<[1], [0], [0], [1], [0, 0, 1, 1], [], []>} : vector<16x16xf32>, vector<16x128xbf16>, vector<16x128xf32> -> vector<16x128xf32>
    %c0_7 = arith.constant 0 : index
    %c0_8 = arith.constant 0 : index
    %c0_9 = arith.constant 0 : index
    %6 = vector.load %arg4[%c0_7, %c0_8, %c0_9] : memref<4x16x128xf32, #tpu.memory_space<vmem>>, vector<1x16x128xf32>
    %7 = vector.shape_cast %6 : vector<1x16x128xf32> to vector<16x128xf32>
    %8 = vector.shape_cast %5 : vector<16x128xf32> to vector<1x16x128xf32>
    tpu.vector_store %arg4[%c0_7, %c0_8, %c0_9], %8 {strides = array<i32>} : memref<4x16x128xf32, #tpu.memory_space<vmem>>, vector<1x16x128xf32>,
    %c1 = arith.constant 1 : index
    %c0_10 = arith.constant 0 : index
    %c0_11 = arith.constant 0 : index
    %9 = vector.load %arg3[%c1, %c0_10, %c0_11] : memref<4x16x16xf32, #tpu.memory_space<vmem>>, vector<1x16x16xf32>
    %10 = vector.shape_cast %9 : vector<1x16x16xf32> to vector<16x16xf32>
    %cst_12 = arith.constant dense<0.000000e+00> : vector<16x16xf32>
    %11 = tpu.matmul %0, %10, %cst_12 {dimension_numbers = #tpu.dot_dimension_numbers<[1], [0], [0], [1], [0, 0, 1, 1], [], []>} : vector<16x16xbf16>, vector<16x16xf32>, vector<16x16xf32> -> vector<16x16xf32>
    %cst_13 = arith.constant dense<0.000000e+00> : vector<16x128xf32>
    %12 = tpu.matmul %11, %1, %cst_13 {dimension_numbers = #tpu.dot_dimension_numbers<[1], [0], [0], [1], [0, 0, 1, 1], [], []>} : vector<16x16xf32>, vector<16x128xbf16>, vector<16x128xf32> -> vector<16x128xf32>
    %c1_14 = arith.constant 1 : index
    %c0_15 = arith.constant 0 : index
    %c0_16 = arith.constant 0 : index
    %13 = vector.load %arg4[%c1_14, %c0_15, %c0_16] : memref<4x16x128xf32, #tpu.memory_space<vmem>>, vector<1x16x128xf32>
    %14 = vector.shape_cast %13 : vector<1x16x128xf32> to vector<16x128xf32>
    %15 = vector.shape_cast %12 : vector<16x128xf32> to vector<1x16x128xf32>
    tpu.vector_store %arg4[%c1_14, %c0_15, %c0_16], %15 {strides = array<i32>} : memref<4x16x128xf32, #tpu.memory_space<vmem>>, vector<1x16x128xf32>,
    %c2 = arith.constant 2 : index
    %c0_17 = arith.constant 0 : index
    %c0_18 = arith.constant 0 : index
    %16 = vector.load %arg3[%c2, %c0_17, %c0_18] : memref<4x16x16xf32, #tpu.memory_space<vmem>>, vector<1x16x16xf32>
    %17 = vector.shape_cast %16 : vector<1x16x16xf32> to vector<16x16xf32>
    %cst_19 = arith.constant dense<0.000000e+00> : vector<16x16xf32>
    %18 = tpu.matmul %0, %17, %cst_19 {dimension_numbers = #tpu.dot_dimension_numbers<[1], [0], [0], [1], [0, 0, 1, 1], [], []>} : vector<16x16xbf16>, vector<16x16xf32>, vector<16x16xf32> -> vector<16x16xf32>
    %cst_20 = arith.constant dense<0.000000e+00> : vector<16x128xf32>
    %19 = tpu.matmul %18, %1, %cst_20 {dimension_numbers = #tpu.dot_dimension_numbers<[1], [0], [0], [1], [0, 0, 1, 1], [], []>} : vector<16x16xf32>, vector<16x128xbf16>, vector<16x128xf32> -> vector<16x128xf32>
    %c2_21 = arith.constant 2 : index
    %c0_22 = arith.constant 0 : index
    %c0_23 = arith.constant 0 : index
    %20 = vector.load %arg4[%c2_21, %c0_22, %c0_23] : memref<4x16x128xf32, #tpu.memory_space<vmem>>, vector<1x16x128xf32>
    %21 = vector.shape_cast %20 : vector<1x16x128xf32> to vector<16x128xf32>
    %22 = vector.shape_cast %19 : vector<16x128xf32> to vector<1x16x128xf32>
    tpu.vector_store %arg4[%c2_21, %c0_22, %c0_23], %22 {strides = array<i32>} : memref<4x16x128xf32, #tpu.memory_space<vmem>>, vector<1x16x128xf32>,
    %c3 = arith.constant 3 : index
    %c0_24 = arith.constant 0 : index
    %c0_25 = arith.constant 0 : index
    %23 = vector.load %arg3[%c3, %c0_24, %c0_25] : memref<4x16x16xf32, #tpu.memory_space<vmem>>, vector<1x16x16xf32>
    %24 = vector.shape_cast %23 : vector<1x16x16xf32> to vector<16x16xf32>
    %cst_26 = arith.constant dense<0.000000e+00> : vector<16x16xf32>
    %25 = tpu.matmul %0, %24, %cst_26 {dimension_numbers = #tpu.dot_dimension_numbers<[1], [0], [0], [1], [0, 0, 1, 1], [], []>} : vector<16x16xbf16>, vector<16x16xf32>, vector<16x16xf32> -> vector<16x16xf32>
    %cst_27 = arith.constant dense<0.000000e+00> : vector<16x128xf32>
    %26 = tpu.matmul %25, %1, %cst_27 {dimension_numbers = #tpu.dot_dimension_numbers<[1], [0], [0], [1], [0, 0, 1, 1], [], []>} : vector<16x16xf32>, vector<16x128xbf16>, vector<16x128xf32> -> vector<16x128xf32>
    %c3_28 = arith.constant 3 : index
    %c0_29 = arith.constant 0 : index
    %c0_30 = arith.constant 0 : index
    %27 = vector.load %arg4[%c3_28, %c0_29, %c0_30] : memref<4x16x128xf32, #tpu.memory_space<vmem>>, vector<1x16x128xf32>
    %28 = vector.shape_cast %27 : vector<1x16x128xf32> to vector<16x128xf32>
    %29 = vector.shape_cast %26 : vector<16x128xf32> to vector<1x16x128xf32>
    tpu.vector_store %arg4[%c3_28, %c0_29, %c0_30], %29 {strides = array<i32>} : memref<4x16x128xf32, #tpu.memory_space<vmem>>, vector<1x16x128xf32>,
    return
  }
  func.func @transform_0(%arg0: i32) -> (i32, i32) {
    %c0_i32 = arith.constant 0 : i32
    %c0_i32_0 = arith.constant 0 : i32
    return %arg0, %c0_i32 : i32, i32
  }
  func.func @transform_1(%arg0: i32) -> (i32, i32) {
    %c0_i32 = arith.constant 0 : i32
    %c0_i32_0 = arith.constant 0 : i32
    %c0_i32_1 = arith.constant 0 : i32
    return %c0_i32, %c0_i32_0 : i32, i32
  }
  func.func @transform_2(%arg0: i32) -> (i32, i32, i32) {
    %c0_i32 = arith.constant 0 : i32
    %c0_i32_0 = arith.constant 0 : i32
    %c0_i32_1 = arith.constant 0 : i32
    %c0_i32_2 = arith.constant 0 : i32
    return %c0_i32, %c0_i32_0, %c0_i32_1 : i32, i32, i32
  }
  func.func @transform_3(%arg0: i32) -> (i32, i32, i32) {
    %c0_i32 = arith.constant 0 : i32
    %c0_i32_0 = arith.constant 0 : i32
    %c0_i32_1 = arith.constant 0 : i32
    return %c0_i32, %arg0, %c0_i32_0 : i32, i32, i32
  }
}

</mosaic_0001>

<llo_original>
// kernel: tpu_custom_call.1
$region0: #{tpu_custom_call.1}
  #allocation0 [shape = 'u32[]', space=smem, size = 0x4, offset = 0x4, fixed_abs, tag = 'smem constant byte address 0x4 - core index']
  #allocation1 [shape = 'u32[144,128]{1,0:T(1,128)}', space=vmem, size = 0x12000, scoped, tag = 'internal scratch']
  #allocation6 [shape = 's32[]', space=sflag, size = 0x4, offset = 0, fixed_abs, tag = 'sflag constant byte address 0x0 - dummy sync flag']
  %s0 = inlined_call_operand.vmem [shape: bf16[32,16], index: 0, kind: input, shape index: {}]
  %s1 = inlined_call_operand.vmem [shape: bf16[16,128], index: 1, kind: input, shape index: {}]
  %s2 = inlined_call_operand.hbm [shape: f32[4,16,16], index: 2, kind: input, shape index: {}]
  %s3 = inlined_call_operand.hbm [shape: f32[4,32,128], index: 3, kind: output, shape index: {}]
  %s4 = sld [smem:[#allocation0]]
  $region49: #{tpu_custom_call.1} parent=0
    _
  %s6 = ssub.s32 1, %s4
  %s7 = scalar_select 0, %s6, %s4
  $region1: #{tpu_custom_call.1} parent=0
    #allocation2 [shape = 'u8[32768]{0}', space=vmem, size = 0x8000, scoped, tag = 'input window, operand 2, single buffered']
    #allocation3 [shape = 's32[2]{0}', space=sflag, size = 0x8, scoped, tag = 'scoped memory for tpu_custom_call.1']
    #allocation4 [shape = 's32[2]{0}', space=sflag, size = 0x8, scoped, tag = 'scoped memory for tpu_custom_call.1']
    #allocation5 [shape = 'u8[65536]{0}', space=vmem, size = 0x10000, scoped, tag = 'output window, operand 0']
    %8 = vsyncpa [#allocation3], 0
    %9 = vsyncpa [#allocation4], 0
    %s10 = scalar_lea.sflag [#allocation4], 1
    %11 = vsyncpa %s10, 0
    loop: start=0, step=1, limit=4
    $region2: #{tpu_custom_call.1} parent=1 // loop_pre_header
      _
    $region3: #{tpu_custom_call.1} parent=1 // loop_header
      %s13 = sphi 0, %s17
      %p14 = scmp.ge.s32.totalorder %s13, 4
      %s23 = sphi 0, %s25
      %s26 = sphi 0, %s23
      %s27 = sphi 0, %s26
      %s43 = sphi 0, %s27
      %s47 = sphi 0, %s47
      %s49 = sphi 0, %s47
      %s50 = sphi 0, %s49
      %s64 = sphi 0, %s50
      %s68 = sphi 0, %s68
      %s70 = sphi 0, %s68
      %s71 = sphi 0, %s70
      %s85 = sphi 0, %s71
      %s91 = sphi 0, %s93
      %s94 = sphi 0, %s91
      %s95 = sphi 0, %s94
      %s111 = sphi 0, %s95
    $region4: #{tpu_custom_call.1} parent=1 // loop_header_branch
      %16 = sbr.rel (%p14) target = $region8
    $region5: #{tpu_custom_call.1} parent=1 // loop_body
      %s18 = ssub.s32 %s13, 1
      %s19 = ssub.s32 %s13, 2
      %s20 = sadd.s32 %s13, 1
      %s21 = ssub.s32 %s13, %s20
      %p22 = scmp.eq.s32.totalorder %s21, 0
      %s24 = sadd.s32 %s23, 1
      %s25 = scalar_select %p22, %s23, %s24
      %p28 = pneg %p22
      %p29 = scmp.eq.s32.totalorder %s13, 1
      %p30 = por %p28, %p29
      %p31 = scmp.ne.s32.totalorder %s23, %s26
      %p32 = scmp.eq.s32.totalorder %s13, 0
      %p33 = por %p31, %p32
      %p34 = scmp.ne.s32.totalorder %s23, %s26
      %p35 = scmp.eq.s32.totalorder %s18, 1
      %p36 = por %p34, %p35
      %p37 = scmp.ne.s32.totalorder %s26, %s27
      %p38 = scmp.eq.s32.totalorder %s18, 0
      %p39 = por %p37, %p38
      %p40 = scmp.ne.s32.totalorder %s26, %s27
      %p41 = scmp.eq.s32.totalorder %s19, 1
      %p42 = por %p40, %p41
      %p44 = scmp.ne.s32.totalorder %s27, %s43
      %p45 = scmp.eq.s32.totalorder %s19, 0
      %p46 = por %p44, %p45
      %s48 = sadd.s32 %s47, 1
      %p51 = scmp.eq.s32.totalorder %s13, 1
      %p52 = scmp.ne.s32.totalorder %s47, %s49
      %p53 = scmp.eq.s32.totalorder %s13, 0
      %p54 = por %p52, %p53
      %p55 = scmp.ne.s32.totalorder %s47, %s49
      %p56 = scmp.eq.s32.totalorder %s18, 1
      %p57 = por %p55, %p56
      %p58 = scmp.ne.s32.totalorder %s49, %s50
      %p59 = scmp.eq.s32.totalorder %s18, 0
      %p60 = por %p58, %p59
      %p61 = scmp.ne.s32.totalorder %s49, %s50
      %p62 = scmp.eq.s32.totalorder %s19, 1
      %p63 = por %p61, %p62
      %p65 = scmp.ne.s32.totalorder %s50, %s64
      %p66 = scmp.eq.s32.totalorder %s19, 0
      %p67 = por %p65, %p66
      %s69 = sadd.s32 %s68, 1
      %p72 = scmp.eq.s32.totalorder %s13, 1
      %p73 = scmp.ne.s32.totalorder %s68, %s70
      %p74 = scmp.eq.s32.totalorder %s13, 0
      %p75 = por %p73, %p74
      %p76 = scmp.ne.s32.totalorder %s68, %s70
      %p77 = scmp.eq.s32.totalorder %s18, 1
      %p78 = por %p76, %p77
      %p79 = scmp.ne.s32.totalorder %s70, %s71
      %p80 = scmp.eq.s32.totalorder %s18, 0
      %p81 = por %p79, %p80
      %p82 = scmp.ne.s32.totalorder %s70, %s71
      %p83 = scmp.eq.s32.totalorder %s19, 1
      %p84 = por %p82, %p83
      %p86 = scmp.ne.s32.totalorder %s71, %s85
      %p87 = scmp.eq.s32.totalorder %s19, 0
      %p88 = por %p86, %p87
      %s89 = ssub.s32 %s13, %s20
      %p90 = scmp.eq.s32.totalorder %s89, 0
      %s92 = sadd.s32 %s91, 1
      %s93 = scalar_select %p90, %s91, %s92
      %p96 = pneg %p90
      %p97 = scmp.eq.s32.totalorder %s13, 1
      %p98 = por %p96, %p97
      %p99 = scmp.ne.s32.totalorder %s91, %s94
      %p100 = scmp.eq.s32.totalorder %s13, 0
      %p101 = por %p99, %p100
      %p102 = scmp.ne.s32.totalorder %s91, %s94
      %p103 = scmp.eq.s32.totalorder %s18, 1
      %p104 = por %p102, %p103
      %p105 = scmp.ne.s32.totalorder %s94, %s95
      %p106 = scmp.eq.s32.totalorder %s18, 0
      %p107 = por %p105, %p106
      %p108 = scmp.ne.s32.totalorder %s94, %s95
      %p109 = scmp.eq.s32.totalorder %s19, 1
      %p110 = por %p108, %p109
      %p112 = scmp.ne.s32.totalorder %s95, %s111
      %p113 = scmp.eq.s32.totalorder %s19, 0
      %p114 = por %p112, %p113
      %p115 = scmp.le.s32.totalorder 1, %s13
      %p116 = scmp.lt.s32.totalorder %s13, 3
      %p117 = pnand %p115, %p116
      %p118 = pneg %p117
      // Predicated region
      $region9: #{tpu_custom_call.1} parent=5 // pred_check
        _
      $region10: #{tpu_custom_call.1} parent=5 // pred_check_branch
        %120 = sbr.rel (%p117) target = $region12
      $region11: #{tpu_custom_call.1} parent=5 // pred_region
        %s121 = ssub.s32 %s13, 1
        // Predicated region
        $region13: #{tpu_custom_call.1} parent=11 // pred_check
          %p122 = pneg %p60
        $region14: #{tpu_custom_call.1} parent=11 // pred_check_branch
          %124 = sbr.rel (%p122) target = $region16
        $region15: #{tpu_custom_call.1} parent=11 // pred_region
          _
        $region16: #{tpu_custom_call.1} parent=11 // pred_fallthru
          _
        // Predicated region
        $region17: #{tpu_custom_call.1} parent=11 // pred_check
          %p125 = pneg %p81
        $region18: #{tpu_custom_call.1} parent=11 // pred_check_branch
          %127 = sbr.rel (%p125) target = $region20
        $region19: #{tpu_custom_call.1} parent=11 // pred_region
          %s129 = ssub.s32 1024, 1024
          %130 = vsyncadd [#allocation3], %s129
          %s131 = sshll.u32 [#allocation2], 4
          %s132 = int_to_ptr.vmem [resolvable:$true] %s131
          %137 = dma.hbm_to_vmem [thread:$0]  %s2, 1024, %s132, [#allocation3], 128, 128, 8
        $region20: #{tpu_custom_call.1} parent=11 // pred_fallthru
          _
      $region12: #{tpu_custom_call.1} parent=5 // pred_fallthru
        _
      %p138 = scmp.lt.s32.totalorder %s13, 2
      // Predicated region
      $region21: #{tpu_custom_call.1} parent=5 // pred_check
        %p139 = pneg %p138
      $region22: #{tpu_custom_call.1} parent=5 // pred_check_branch
        %141 = sbr.rel (%p139) target = $region24
      $region23: #{tpu_custom_call.1} parent=5 // pred_region
        // Predicated region
        $region25: #{tpu_custom_call.1} parent=23 // pred_check
          %p142 = pneg %p33
        $region26: #{tpu_custom_call.1} parent=23 // pred_check_branch
          %144 = sbr.rel (%p142) target = $region28
        $region27: #{tpu_custom_call.1} parent=23 // pred_region
          %s145 = smul.u32 2, %s13
          %p146 = scmp.lt.s32.totalorder %s145, 3
          %s147 = scalar_select %p146, %s145, 3
          %s148 = smul.addr %s147, 4
          %s149 = scalar_lea.vmem %s0, %s148
          %s150 = smul.u32 2, %s13
        $region28: #{tpu_custom_call.1} parent=23 // pred_fallthru
          _
      $region24: #{tpu_custom_call.1} parent=5 // pred_fallthru
        _
      %p151 = scmp.le.s32.totalorder 1, %s13
      %p152 = scmp.lt.s32.totalorder %s13, 3
      %p153 = pnand %p151, %p152
      %p154 = pneg %p153
      // Predicated region
      $region29: #{tpu_custom_call.1} parent=5 // pred_check
        _
      $region30: #{tpu_custom_call.1} parent=5 // pred_check_branch
        %156 = sbr.rel (%p153) target = $region32
      $region31: #{tpu_custom_call.1} parent=5 // pred_region
        %s157 = ssub.s32 %s13, 1
        // Predicated region
        $region33: #{tpu_custom_call.1} parent=31 // pred_check
          %p158 = pneg %p81
        $region34: #{tpu_custom_call.1} parent=31 // pred_check_branch
          %160 = sbr.rel (%p158) target = $region36
        $region35: #{tpu_custom_call.1} parent=31 // pred_region
          %161 = dma.done [#allocation3], 1024
        $region36: #{tpu_custom_call.1} parent=31 // pred_fallthru
          _
        %s162 = smul.u32 2, %s18
        %p163 = scmp.lt.s32.totalorder %s162, 3
        %s164 = scalar_select %p163, %s162, 3
        %s165 = smul.addr %s164, 4
        %s166 = scalar_lea.vmem %s0, %s165
        %p167 = pneg %p39
        %p168 = pneg %p36
        %p169 = pneg %p60
        %p170 = pneg %p57
        %p171 = pneg %p81
        %p172 = pneg %p78
        %p173 = pneg %p107
        %p174 = pneg %p104
        %s175 = sand.u32 %s94, 1
        %s176 = scalar_lea.sflag [#allocation4], %s175
        %s177 = sand.u32 %s94, 1
        %s178 = smul.addr %s177, 64
        %s179 = scalar_lea.vmem [#allocation5], %s178
        %s180 = smul.u32 2, %s18
        %p181 = scmp.lt.s32.totalorder %s180, 3
        %s182 = scalar_select %p181, %s180, 3
        %s183 = smul.addr %s182, 4
        %s184 = scalar_lea.vmem %s0, %s183
        %s185 = smul.u32 2, %s18
        %s186 = smul.u32 2, %s18
        %v188 = vld [vmem:[%s184] sm:$0xf]
        %v189 = vld [vmem:[%s184 + $0x4] sm:$0xf]
        %v190 = vld [vmem:[%s1] sm:$0xf]
        %v191 = vld [vmem:[%s1 + $0x4] sm:$0xf]
        %v192 = vld [vmem:[#allocation2] sm:$0xff]
        %v193 = vld [vmem:[#allocation2 + $0x8] sm:$0xff]
        %v196 = vunpack.c.l.b16 %v188
        %v197 = vunpack.c.l.b16 %v189
        %v198 = vpack.c.b16 %v197, %v196
        %vm199 = vcmask 130048
        %v201 = vsel %vm199, %v198, 0
        %203 = vmatprep.subr.mxu0 0.0
        %204 = vmatpush1.msra.mxu0 %v192
        %205 = vmatprep.subr.mxu0 0.0
        %206 = vmatpush1.msra.mxu0 %v193
        %207 = vmatprep.subr.mxu0 0.0
        %208 = vmatpush1.msra.mxu0 0.0
        %209 = vmatprep.subr.mxu0 0.0
        %210 = vmatpush1.msra.mxu0 0.0
        %211 = vmatprep.subr.mxu0 0.0
        %212 = vmatpush1.msra.mxu0 0.0
        %213 = vmatprep.subr.mxu0 0.0
        %214 = vmatpush1.msra.mxu0 0.0
        %215 = vmatprep.subr.mxu0 0.0
        %216 = vmatpush1.msra.mxu0 0.0
        %217 = vmatprep.subr.mxu0 0.0
        %218 = vmatpush1.msra.mxu0 0.0
        %219 = vmatprep.subr.mxu0 0.0
        %220 = vmatpush1.msra.mxu0 0.0
        %221 = vmatprep.subr.mxu0 0.0
        %222 = vmatpush1.msra.mxu0 0.0
        %223 = vmatprep.subr.mxu0 0.0
        %224 = vmatpush1.msra.mxu0 0.0
        %225 = vmatprep.subr.mxu0 0.0
        %226 = vmatpush1.msra.mxu0 0.0
        %227 = vmatprep.subr.mxu0 0.0
        %228 = vmatpush1.msra.mxu0 0.0
        %229 = vmatprep.subr.mxu0 0.0
        %230 = vmatpush1.msra.mxu0 0.0
        %231 = vmatprep.subr.mxu0 0.0
        %232 = vmatpush1.msra.mxu0 0.0
        %233 = vmatprep.subr.mxu0 0.0
        %234 = vmatpush1.msra.mxu0 0.0
        %235 = vmatprep.subr.mxu0 0.0
        %236 = vmatpush1.msra.mxu0 0.0
        %237 = vmatprep.subr.mxu0 0.0
        %238 = vmatpush1.msra.mxu0 0.0
        %239 = vmatprep.subr.mxu0 0.0
        %240 = vmatpush1.msra.mxu0 0.0
        %241 = vmatprep.subr.mxu0 0.0
        %242 = vmatpush1.msra.mxu0 0.0
        %243 = vmatprep.subr.mxu0 0.0
        %244 = vmatpush1.msra.mxu0 0.0
        %245 = vmatprep.subr.mxu0 0.0
        %246 = vmatpush1.msra.mxu0 0.0
        %247 = vmatprep.subr.mxu0 0.0
        %248 = vmatpush1.msra.mxu0 0.0
        %249 = vmatprep.subr.mxu0 0.0
        %250 = vmatpush1.msra.mxu0 0.0
        %251 = vmatprep.subr.mxu0 0.0
        %252 = vmatpush1.msra.mxu0 0.0
        %253 = vmatprep.subr.mxu0 0.0
        %254 = vmatpush1.msra.mxu0 0.0
        %255 = vmatprep.subr.mxu0 0.0
        %256 = vmatpush1.msra.mxu0 0.0
        %257 = vmatprep.subr.mxu0 0.0
        %258 = vmatpush1.msra.mxu0 0.0
        %259 = vmatprep.subr.mxu0 0.0
        %260 = vmatpush1.msra.mxu0 0.0
        %261 = vmatprep.subr.mxu0 0.0
        %262 = vmatpush1.msra.mxu0 0.0
        %263 = vmatprep.subr.mxu0 0.0
        %264 = vmatpush1.msra.mxu0 0.0
        %265 = vmatprep.subr.mxu0 0.0
        %266 = vmatpush1.msra.mxu0 0.0
        %267 = vmatprep.mubr.bf16.mxu0 0
        %268 = vmatmul.mubr.bf16.gmra.mrb[0].mxu0 %v201
        %v269 = vpop.f32.mrb[0].mxu0
        %v270 = vadd.f32 0.0, %v269
        %v271 = vpop.f32.mrb[0].mxu0
        %v272 = vpop.f32.mrb[0].mxu0
        %v273 = vadd.f32 0.0, %v272
        %v274 = vpop.f32.mrb[0].mxu0
        %275 = vdwg.mxu0
        %v278 = vunpack.c.l.b16 %v190
        %v279 = vunpack.c.l.b16 %v191
        %v280 = vpack.c.b16 %v279, %v278
        %v283 = vsel %vm199, %v270, 0
        %v286 = vsel %vm199, %v273, 0
        %288 = vmatprep.subr.bf16.mxu0 0
        %289 = vmatpush1.bf16.msra.mxu0 %v280
        %290 = vmatprep.subr.bf16.mxu0 0
        %291 = vmatpush1.bf16.msra.mxu0 0
        %292 = vmatprep.subr.bf16.mxu0 0
        %293 = vmatpush1.bf16.msra.mxu0 0
        %294 = vmatprep.subr.bf16.mxu0 0
        %295 = vmatpush1.bf16.msra.mxu0 0
        %296 = vmatprep.subr.bf16.mxu0 0
        %297 = vmatpush1.bf16.msra.mxu0 0
        %298 = vmatprep.subr.bf16.mxu0 0
        %299 = vmatpush1.bf16.msra.mxu0 0
        %300 = vmatprep.subr.bf16.mxu0 0
        %301 = vmatpush1.bf16.msra.mxu0 0
        %302 = vmatprep.subr.bf16.mxu0 0
        %303 = vmatpush1.bf16.msra.mxu0 0
        %304 = vmatprep.subr.bf16.mxu0 0
        %305 = vmatpush1.bf16.msra.mxu0 0
        %306 = vmatprep.subr.bf16.mxu0 0
        %307 = vmatpush1.bf16.msra.mxu0 0
        %308 = vmatprep.subr.bf16.mxu0 0
        %309 = vmatpush1.bf16.msra.mxu0 0
        %310 = vmatprep.subr.bf16.mxu0 0
        %311 = vmatpush1.bf16.msra.mxu0 0
        %312 = vmatprep.subr.bf16.mxu0 0
        %313 = vmatpush1.bf16.msra.mxu0 0
        %314 = vmatprep.subr.bf16.mxu0 0
        %315 = vmatpush1.bf16.msra.mxu0 0
        %316 = vmatprep.subr.bf16.mxu0 0
        %317 = vmatpush1.bf16.msra.mxu0 0
        %318 = vmatprep.subr.bf16.mxu0 0
        %319 = vmatpush1.bf16.msra.mxu0 0
        %320 = vmatprep.mubr.f32.mxu0 0.0
        %321 = vmatmul.mubr.f32.gmra.mrb[0].mxu0 %v283
        %v322 = vpop.f32.mrb[0].mxu0
        %v323 = vadd.f32 0.0, %v322
        %v324 = vpop.f32.mrb[0].mxu0
        %325 = vmatprep.mubr.f32.mxu0 0.0
        %326 = vmatmul.mubr.f32.gmra.mrb[0].mxu0 %v286
        %v327 = vpop.f32.mrb[0].mxu0
        %v328 = vadd.f32 0.0, %v327
        %v329 = vpop.f32.mrb[0].mxu0
        %330 = vdwg.mxu0
        %331 = vst [vmem:[%s179] sm:$0xff] %v323
        %332 = vst [vmem:[%s179 + $0x8] sm:$0xff] %v328
        %s333 = scalar_lea.vmem [#allocation2], 16
        %v334 = vld [vmem:[%s333] sm:$0xff]
        %v335 = vld [vmem:[%s333 + $0x8] sm:$0xff]
        %336 = vmatprep.subr.mxu0 0.0
        %337 = vmatpush1.msra.mxu0 %v334
        %338 = vmatprep.subr.mxu0 0.0
        %339 = vmatpush1.msra.mxu0 %v335
        %340 = vmatprep.subr.mxu0 0.0
        %341 = vmatpush1.msra.mxu0 0.0
        %342 = vmatprep.subr.mxu0 0.0
        %343 = vmatpush1.msra.mxu0 0.0
        %344 = vmatprep.subr.mxu0 0.0
        %345 = vmatpush1.msra.mxu0 0.0
        %346 = vmatprep.subr.mxu0 0.0
        %347 = vmatpush1.msra.mxu0 0.0
        %348 = vmatprep.subr.mxu0 0.0
        %349 = vmatpush1.msra.mxu0 0.0
        %350 = vmatprep.subr.mxu0 0.0
        %351 = vmatpush1.msra.mxu0 0.0
        %352 = vmatprep.subr.mxu0 0.0
        %353 = vmatpush1.msra.mxu0 0.0
        %354 = vmatprep.subr.mxu0 0.0
        %355 = vmatpush1.msra.mxu0 0.0
        %356 = vmatprep.subr.mxu0 0.0
        %357 = vmatpush1.msra.mxu0 0.0
        %358 = vmatprep.subr.mxu0 0.0
        %359 = vmatpush1.msra.mxu0 0.0
        %360 = vmatprep.subr.mxu0 0.0
        %361 = vmatpush1.msra.mxu0 0.0
        %362 = vmatprep.subr.mxu0 0.0
        %363 = vmatpush1.msra.mxu0 0.0
        %364 = vmatprep.subr.mxu0 0.0
        %365 = vmatpush1.msra.mxu0 0.0
        %366 = vmatprep.subr.mxu0 0.0
        %367 = vmatpush1.msra.mxu0 0.0
        %368 = vmatprep.subr.mxu0 0.0
        %369 = vmatpush1.msra.mxu0 0.0
        %370 = vmatprep.subr.mxu0 0.0
        %371 = vmatpush1.msra.mxu0 0.0
        %372 = vmatprep.subr.mxu0 0.0
        %373 = vmatpush1.msra.mxu0 0.0
        %374 = vmatprep.subr.mxu0 0.0
        %375 = vmatpush1.msra.mxu0 0.0
        %376 = vmatprep.subr.mxu0 0.0
        %377 = vmatpush1.msra.mxu0 0.0
        %378 = vmatprep.subr.mxu0 0.0
        %379 = vmatpush1.msra.mxu0 0.0
        %380 = vmatprep.subr.mxu0 0.0
        %381 = vmatpush1.msra.mxu0 0.0
        %382 = vmatprep.subr.mxu0 0.0
        %383 = vmatpush1.msra.mxu0 0.0
        %384 = vmatprep.subr.mxu0 0.0
        %385 = vmatpush1.msra.mxu0 0.0
        %386 = vmatprep.subr.mxu0 0.0
        %387 = vmatpush1.msra.mxu0 0.0
        %388 = vmatprep.subr.mxu0 0.0
        %389 = vmatpush1.msra.mxu0 0.0
        %390 = vmatprep.subr.mxu0 0.0
        %391 = vmatpush1.msra.mxu0 0.0
        %392 = vmatprep.subr.mxu0 0.0
        %393 = vmatpush1.msra.mxu0 0.0
        %394 = vmatprep.subr.mxu0 0.0
        %395 = vmatpush1.msra.mxu0 0.0
        %396 = vmatprep.subr.mxu0 0.0
        %397 = vmatpush1.msra.mxu0 0.0
        %398 = vmatprep.subr.mxu0 0.0
        %399 = vmatpush1.msra.mxu0 0.0
        %400 = vmatprep.mubr.bf16.mxu0 0
        %401 = vmatmul.mubr.bf16.gmra.mrb[0].mxu0 %v201
        %v402 = vpop.f32.mrb[0].mxu0
        %v403 = vadd.f32 0.0, %v402
        %v404 = vpop.f32.mrb[0].mxu0
        %v405 = vpop.f32.mrb[0].mxu0
        %v406 = vadd.f32 0.0, %v405
        %v407 = vpop.f32.mrb[0].mxu0
        %408 = vdwg.mxu0
        %v410 = vsel %vm199, %v403, 0
        %v413 = vsel %vm199, %v406, 0
        %415 = vmatprep.subr.bf16.mxu0 0
        %416 = vmatpush1.bf16.msra.mxu0 %v280
        %417 = vmatprep.subr.bf16.mxu0 0
        %418 = vmatpush1.bf16.msra.mxu0 0
        %419 = vmatprep.subr.bf16.mxu0 0
        %420 = vmatpush1.bf16.msra.mxu0 0
        %421 = vmatprep.subr.bf16.mxu0 0
        %422 = vmatpush1.bf16.msra.mxu0 0
        %423 = vmatprep.subr.bf16.mxu0 0
        %424 = vmatpush1.bf16.msra.mxu0 0
        %425 = vmatprep.subr.bf16.mxu0 0
        %426 = vmatpush1.bf16.msra.mxu0 0
        %427 = vmatprep.subr.bf16.mxu0 0
        %428 = vmatpush1.bf16.msra.mxu0 0
        %429 = vmatprep.subr.bf16.mxu0 0
        %430 = vmatpush1.bf16.msra.mxu0 0
        %431 = vmatprep.subr.bf16.mxu0 0
        %432 = vmatpush1.bf16.msra.mxu0 0
        %433 = vmatprep.subr.bf16.mxu0 0
        %434 = vmatpush1.bf16.msra.mxu0 0
        %435 = vmatprep.subr.bf16.mxu0 0
        %436 = vmatpush1.bf16.msra.mxu0 0
        %437 = vmatprep.subr.bf16.mxu0 0
        %438 = vmatpush1.bf16.msra.mxu0 0
        %439 = vmatprep.subr.bf16.mxu0 0
        %440 = vmatpush1.bf16.msra.mxu0 0
        %441 = vmatprep.subr.bf16.mxu0 0
        %442 = vmatpush1.bf16.msra.mxu0 0
        %443 = vmatprep.subr.bf16.mxu0 0
        %444 = vmatpush1.bf16.msra.mxu0 0
        %445 = vmatprep.subr.bf16.mxu0 0
        %446 = vmatpush1.bf16.msra.mxu0 0
        %447 = vmatprep.mubr.f32.mxu0 0.0
        %448 = vmatmul.mubr.f32.gmra.mrb[0].mxu0 %v410
        %v449 = vpop.f32.mrb[0].mxu0
        %v450 = vadd.f32 0.0, %v449
        %v451 = vpop.f32.mrb[0].mxu0
        %452 = vmatprep.mubr.f32.mxu0 0.0
        %453 = vmatmul.mubr.f32.gmra.mrb[0].mxu0 %v413
        %v454 = vpop.f32.mrb[0].mxu0
        %v455 = vadd.f32 0.0, %v454
        %v456 = vpop.f32.mrb[0].mxu0
        %457 = vdwg.mxu0
        %s458 = scalar_lea.vmem %s179, 16 [#allocation5]
        %459 = vst [vmem:[%s458] sm:$0xff] %v450
        %460 = vst [vmem:[%s458 + $0x8] sm:$0xff] %v455
        %s461 = scalar_lea.vmem [#allocation2], 32
        %v462 = vld [vmem:[%s461] sm:$0xff]
        %v463 = vld [vmem:[%s461 + $0x8] sm:$0xff]
        %464 = vmatprep.subr.mxu0 0.0
        %465 = vmatpush1.msra.mxu0 %v462
        %466 = vmatprep.subr.mxu0 0.0
        %467 = vmatpush1.msra.mxu0 %v463
        %468 = vmatprep.subr.mxu0 0.0
        %469 = vmatpush1.msra.mxu0 0.0
        %470 = vmatprep.subr.mxu0 0.0
        %471 = vmatpush1.msra.mxu0 0.0
        %472 = vmatprep.subr.mxu0 0.0
        %473 = vmatpush1.msra.mxu0 0.0
        %474 = vmatprep.subr.mxu0 0.0
        %475 = vmatpush1.msra.mxu0 0.0
        %476 = vmatprep.subr.mxu0 0.0
        %477 = vmatpush1.msra.mxu0 0.0
        %478 = vmatprep.subr.mxu0 0.0
        %479 = vmatpush1.msra.mxu0 0.0
        %480 = vmatprep.subr.mxu0 0.0
        %481 = vmatpush1.msra.mxu0 0.0
        %482 = vmatprep.subr.mxu0 0.0
        %483 = vmatpush1.msra.mxu0 0.0
        %484 = vmatprep.subr.mxu0 0.0
        %485 = vmatpush1.msra.mxu0 0.0
        %486 = vmatprep.subr.mxu0 0.0
        %487 = vmatpush1.msra.mxu0 0.0
        %488 = vmatprep.subr.mxu0 0.0
        %489 = vmatpush1.msra.mxu0 0.0
        %490 = vmatprep.subr.mxu0 0.0
        %491 = vmatpush1.msra.mxu0 0.0
        %492 = vmatprep.subr.mxu0 0.0
        %493 = vmatpush1.msra.mxu0 0.0
        %494 = vmatprep.subr.mxu0 0.0
        %495 = vmatpush1.msra.mxu0 0.0
        %496 = vmatprep.subr.mxu0 0.0
        %497 = vmatpush1.msra.mxu0 0.0
        %498 = vmatprep.subr.mxu0 0.0
        %499 = vmatpush1.msra.mxu0 0.0
        %500 = vmatprep.subr.mxu0 0.0
        %501 = vmatpush1.msra.mxu0 0.0
        %502 = vmatprep.subr.mxu0 0.0
        %503 = vmatpush1.msra.mxu0 0.0
        %504 = vmatprep.subr.mxu0 0.0
        %505 = vmatpush1.msra.mxu0 0.0
        %506 = vmatprep.subr.mxu0 0.0
        %507 = vmatpush1.msra.mxu0 0.0
        %508 = vmatprep.subr.mxu0 0.0
        %509 = vmatpush1.msra.mxu0 0.0
        %510 = vmatprep.subr.mxu0 0.0
        %511 = vmatpush1.msra.mxu0 0.0
        %512 = vmatprep.subr.mxu0 0.0
        %513 = vmatpush1.msra.mxu0 0.0
        %514 = vmatprep.subr.mxu0 0.0
        %515 = vmatpush1.msra.mxu0 0.0
        %516 = vmatprep.subr.mxu0 0.0
        %517 = vmatpush1.msra.mxu0 0.0
        %518 = vmatprep.subr.mxu0 0.0
        %519 = vmatpush1.msra.mxu0 0.0
        %520 = vmatprep.subr.mxu0 0.0
        %521 = vmatpush1.msra.mxu0 0.0
        %522 = vmatprep.subr.mxu0 0.0
        %523 = vmatpush1.msra.mxu0 0.0
        %524 = vmatprep.subr.mxu0 0.0
        %525 = vmatpush1.msra.mxu0 0.0
        %526 = vmatprep.subr.mxu0 0.0
        %527 = vmatpush1.msra.mxu0 0.0
        %528 = vmatprep.mubr.bf16.mxu0 0
        %529 = vmatmul.mubr.bf16.gmra.mrb[0].mxu0 %v201
        %v530 = vpop.f32.mrb[0].mxu0
        %v531 = vadd.f32 0.0, %v530
        %v532 = vpop.f32.mrb[0].mxu0
        %v533 = vpop.f32.mrb[0].mxu0
        %v534 = vadd.f32 0.0, %v533
        %v535 = vpop.f32.mrb[0].mxu0
        %536 = vdwg.mxu0
        %v538 = vsel %vm199, %v531, 0
        %v541 = vsel %vm199, %v534, 0
        %543 = vmatprep.subr.bf16.mxu0 0
        %544 = vmatpush1.bf16.msra.mxu0 %v280
        %545 = vmatprep.subr.bf16.mxu0 0
        %546 = vmatpush1.bf16.msra.mxu0 0
        %547 = vmatprep.subr.bf16.mxu0 0
        %548 = vmatpush1.bf16.msra.mxu0 0
        %549 = vmatprep.subr.bf16.mxu0 0
        %550 = vmatpush1.bf16.msra.mxu0 0
        %551 = vmatprep.subr.bf16.mxu0 0
        %552 = vmatpush1.bf16.msra.mxu0 0
        %553 = vmatprep.subr.bf16.mxu0 0
        %554 = vmatpush1.bf16.msra.mxu0 0
        %555 = vmatprep.subr.bf16.mxu0 0
        %556 = vmatpush1.bf16.msra.mxu0 0
        %557 = vmatprep.subr.bf16.mxu0 0
        %558 = vmatpush1.bf16.msra.mxu0 0
        %559 = vmatprep.subr.bf16.mxu0 0
        %560 = vmatpush1.bf16.msra.mxu0 0
        %561 = vmatprep.subr.bf16.mxu0 0
        %562 = vmatpush1.bf16.msra.mxu0 0
        %563 = vmatprep.subr.bf16.mxu0 0
        %564 = vmatpush1.bf16.msra.mxu0 0
        %565 = vmatprep.subr.bf16.mxu0 0
        %566 = vmatpush1.bf16.msra.mxu0 0
        %567 = vmatprep.subr.bf16.mxu0 0
        %568 = vmatpush1.bf16.msra.mxu0 0
        %569 = vmatprep.subr.bf16.mxu0 0
        %570 = vmatpush1.bf16.msra.mxu0 0
        %571 = vmatprep.subr.bf16.mxu0 0
        %572 = vmatpush1.bf16.msra.mxu0 0
        %573 = vmatprep.subr.bf16.mxu0 0
        %574 = vmatpush1.bf16.msra.mxu0 0
        %575 = vmatprep.mubr.f32.mxu0 0.0
        %576 = vmatmul.mubr.f32.gmra.mrb[0].mxu0 %v538
        %v577 = vpop.f32.mrb[0].mxu0
        %v578 = vadd.f32 0.0, %v577
        %v579 = vpop.f32.mrb[0].mxu0
        %580 = vmatprep.mubr.f32.mxu0 0.0
        %581 = vmatmul.mubr.f32.gmra.mrb[0].mxu0 %v541
        %v582 = vpop.f32.mrb[0].mxu0
        %v583 = vadd.f32 0.0, %v582
        %v584 = vpop.f32.mrb[0].mxu0
        %585 = vdwg.mxu0
        %s586 = scalar_lea.vmem %s179, 32 [#allocation5]
        %587 = vst [vmem:[%s586] sm:$0xff] %v578
        %588 = vst [vmem:[%s586 + $0x8] sm:$0xff] %v583
        %s589 = scalar_lea.vmem [#allocation2], 48
        %v590 = vld [vmem:[%s589] sm:$0xff]
        %v591 = vld [vmem:[%s589 + $0x8] sm:$0xff]
        %592 = vmatprep.subr.mxu0 0.0
        %593 = vmatpush1.msra.mxu0 %v590
        %594 = vmatprep.subr.mxu0 0.0
        %595 = vmatpush1.msra.mxu0 %v591
        %596 = vmatprep.subr.mxu0 0.0
        %597 = vmatpush1.msra.mxu0 0.0
        %598 = vmatprep.subr.mxu0 0.0
        %599 = vmatpush1.msra.mxu0 0.0
        %600 = vmatprep.subr.mxu0 0.0
        %601 = vmatpush1.msra.mxu0 0.0
        %602 = vmatprep.subr.mxu0 0.0
        %603 = vmatpush1.msra.mxu0 0.0
        %604 = vmatprep.subr.mxu0 0.0
        %605 = vmatpush1.msra.mxu0 0.0
        %606 = vmatprep.subr.mxu0 0.0
        %607 = vmatpush1.msra.mxu0 0.0
        %608 = vmatprep.subr.mxu0 0.0
        %609 = vmatpush1.msra.mxu0 0.0
        %610 = vmatprep.subr.mxu0 0.0
        %611 = vmatpush1.msra.mxu0 0.0
        %612 = vmatprep.subr.mxu0 0.0
        %613 = vmatpush1.msra.mxu0 0.0
        %614 = vmatprep.subr.mxu0 0.0
        %615 = vmatpush1.msra.mxu0 0.0
        %616 = vmatprep.subr.mxu0 0.0
        %617 = vmatpush1.msra.mxu0 0.0
        %618 = vmatprep.subr.mxu0 0.0
        %619 = vmatpush1.msra.mxu0 0.0
        %620 = vmatprep.subr.mxu0 0.0
        %621 = vmatpush1.msra.mxu0 0.0
        %622 = vmatprep.subr.mxu0 0.0
        %623 = vmatpush1.msra.mxu0 0.0
        %624 = vmatprep.subr.mxu0 0.0
        %625 = vmatpush1.msra.mxu0 0.0
        %626 = vmatprep.subr.mxu0 0.0
        %627 = vmatpush1.msra.mxu0 0.0
        %628 = vmatprep.subr.mxu0 0.0
        %629 = vmatpush1.msra.mxu0 0.0
        %630 = vmatprep.subr.mxu0 0.0
        %631 = vmatpush1.msra.mxu0 0.0
        %632 = vmatprep.subr.mxu0 0.0
        %633 = vmatpush1.msra.mxu0 0.0
        %634 = vmatprep.subr.mxu0 0.0
        %635 = vmatpush1.msra.mxu0 0.0
        %636 = vmatprep.subr.mxu0 0.0
        %637 = vmatpush1.msra.mxu0 0.0
        %638 = vmatprep.subr.mxu0 0.0
        %639 = vmatpush1.msra.mxu0 0.0
        %640 = vmatprep.subr.mxu0 0.0
        %641 = vmatpush1.msra.mxu0 0.0
        %642 = vmatprep.subr.mxu0 0.0
        %643 = vmatpush1.msra.mxu0 0.0
        %644 = vmatprep.subr.mxu0 0.0
        %645 = vmatpush1.msra.mxu0 0.0
        %646 = vmatprep.subr.mxu0 0.0
        %647 = vmatpush1.msra.mxu0 0.0
        %648 = vmatprep.subr.mxu0 0.0
        %649 = vmatpush1.msra.mxu0 0.0
        %650 = vmatprep.subr.mxu0 0.0
        %651 = vmatpush1.msra.mxu0 0.0
        %652 = vmatprep.subr.mxu0 0.0
        %653 = vmatpush1.msra.mxu0 0.0
        %654 = vmatprep.subr.mxu0 0.0
        %655 = vmatpush1.msra.mxu0 0.0
        %656 = vmatprep.mubr.bf16.mxu0 0
        %657 = vmatmul.mubr.bf16.gmra.mrb[0].mxu0 %v201
        %v658 = vpop.f32.mrb[0].mxu0
        %v659 = vadd.f32 0.0, %v658
        %v660 = vpop.f32.mrb[0].mxu0
        %v661 = vpop.f32.mrb[0].mxu0
        %v662 = vadd.f32 0.0, %v661
        %v663 = vpop.f32.mrb[0].mxu0
        %664 = vdwg.mxu0
        %v666 = vsel %vm199, %v659, 0
        %v669 = vsel %vm199, %v662, 0
        %671 = vmatprep.subr.bf16.mxu0 0
        %672 = vmatpush1.bf16.msra.mxu0 %v280
        %673 = vmatprep.subr.bf16.mxu0 0
        %674 = vmatpush1.bf16.msra.mxu0 0
        %675 = vmatprep.subr.bf16.mxu0 0
        %676 = vmatpush1.bf16.msra.mxu0 0
        %677 = vmatprep.subr.bf16.mxu0 0
        %678 = vmatpush1.bf16.msra.mxu0 0
        %679 = vmatprep.subr.bf16.mxu0 0
        %680 = vmatpush1.bf16.msra.mxu0 0
        %681 = vmatprep.subr.bf16.mxu0 0
        %682 = vmatpush1.bf16.msra.mxu0 0
        %683 = vmatprep.subr.bf16.mxu0 0
        %684 = vmatpush1.bf16.msra.mxu0 0
        %685 = vmatprep.subr.bf16.mxu0 0
        %686 = vmatpush1.bf16.msra.mxu0 0
        %687 = vmatprep.subr.bf16.mxu0 0
        %688 = vmatpush1.bf16.msra.mxu0 0
        %689 = vmatprep.subr.bf16.mxu0 0
        %690 = vmatpush1.bf16.msra.mxu0 0
        %691 = vmatprep.subr.bf16.mxu0 0
        %692 = vmatpush1.bf16.msra.mxu0 0
        %693 = vmatprep.subr.bf16.mxu0 0
        %694 = vmatpush1.bf16.msra.mxu0 0
        %695 = vmatprep.subr.bf16.mxu0 0
        %696 = vmatpush1.bf16.msra.mxu0 0
        %697 = vmatprep.subr.bf16.mxu0 0
        %698 = vmatpush1.bf16.msra.mxu0 0
        %699 = vmatprep.subr.bf16.mxu0 0
        %700 = vmatpush1.bf16.msra.mxu0 0
        %701 = vmatprep.subr.bf16.mxu0 0
        %702 = vmatpush1.bf16.msra.mxu0 0
        %703 = vmatprep.mubr.f32.mxu0 0.0
        %704 = vmatmul.mubr.f32.gmra.mrb[0].mxu0 %v666
        %v705 = vpop.f32.mrb[0].mxu0
        %v706 = vadd.f32 0.0, %v705
        %v707 = vpop.f32.mrb[0].mxu0
        %708 = vmatprep.mubr.f32.mxu0 0.0
        %709 = vmatmul.mubr.f32.gmra.mrb[0].mxu0 %v669
        %v710 = vpop.f32.mrb[0].mxu0
        %v711 = vadd.f32 0.0, %v710
        %v712 = vpop.f32.mrb[0].mxu0
        %713 = vdwg.mxu0
        %s714 = scalar_lea.vmem %s179, 48 [#allocation5]
        %715 = vst [vmem:[%s714] sm:$0xff] %v706
        %716 = vst [vmem:[%s714 + $0x8] sm:$0xff] %v711
        %s717 = sand.u32 %s94, 1
        %s718 = scalar_lea.sflag [#allocation4], %s717
        %s719 = sand.u32 %s94, 1
        %s720 = smul.addr %s719, 64
        %s721 = scalar_lea.vmem [#allocation5], %s720
        // Predicated region
        $region37: #{tpu_custom_call.1} parent=31 // pred_check
          %p722 = pneg %p104
        $region38: #{tpu_custom_call.1} parent=31 // pred_check_branch
          %724 = sbr.rel (%p722) target = $region40
        $region39: #{tpu_custom_call.1} parent=31 // pred_region
          #allocation7 [shape = 'u32[6]{0}', space=smem, size = 0x18, scoped, tag = 'DMA stride descriptor']
          %s725 = smul.u32 2, %s18
          %s727 = ssub.s32 1024, 1024
          %728 = vsyncadd %s718, %s727
          %s729 = smul.addr %s725, 128
          %s730 = scalar_lea.hbm %s3, %s729
          %s732 = sshll.u32 1, 14
          %s733 = sxor.u32 4294967295, %s732
          %s736 = sshll.u32 7, 18
          %s737 = sxor.u32 4294967295, %s736
          %s738 = sand.u32 0, %s737
          %s740 = sor.u32 %s738, 0
          %s742 = sshll.u32 3, 24
          %s743 = sxor.u32 4294967295, %s742
          %s744 = sand.u32 %s740, %s743
          %s746 = sor.u32 %s744, 0
          %s747 = sshll.u32 %s721, 4
          %s748 = int_to_ptr.vmem [resolvable:$true] %s747
          %754 = sst [smem:[#allocation7]] 256
          %s755 = scalar_lea.smem [#allocation7], 1
          %756 = sst [smem:[%s755]] 512
          %s757 = scalar_lea.smem [#allocation7], 2
          %758 = sst [smem:[%s757]] 2
          %s759 = scalar_lea.smem [#allocation7], 3
          %760 = sst [smem:[%s759]] 128
          %s761 = scalar_lea.smem [#allocation7], 4
          %762 = sst [smem:[%s761]] 128
          %s763 = scalar_lea.smem [#allocation7], 5
          %764 = sst [smem:[%s763]] 8
          %766 = dma.general %s748, 1024, %s730, %s718, [#allocation6], [#allocation7], %s746, 0
        $region40: #{tpu_custom_call.1} parent=31 // pred_fallthru
          _
      $region32: #{tpu_custom_call.1} parent=5 // pred_fallthru
        _
      %p767 = scmp.le.s32.totalorder 2, %s13
      // Predicated region
      $region41: #{tpu_custom_call.1} parent=5 // pred_check
        %p768 = pneg %p767
      $region42: #{tpu_custom_call.1} parent=5 // pred_check_branch
        %770 = sbr.rel (%p768) target = $region44
      $region43: #{tpu_custom_call.1} parent=5 // pred_region
        %s771 = ssub.s32 %s13, 2
        // Predicated region
        $region45: #{tpu_custom_call.1} parent=43 // pred_check
          %p772 = pneg %p110
        $region46: #{tpu_custom_call.1} parent=43 // pred_check_branch
          %774 = sbr.rel (%p772) target = $region48
        $region47: #{tpu_custom_call.1} parent=43 // pred_region
          %s775 = sand.u32 %s95, 1
          %s776 = scalar_lea.sflag [#allocation4], %s775
          %s777 = sand.u32 %s95, 1
          %s778 = smul.addr %s777, 64
          %s779 = scalar_lea.vmem [#allocation5], %s778
          %780 = dma.done %s776, 1024
        $region48: #{tpu_custom_call.1} parent=43 // pred_fallthru
          _
      $region44: #{tpu_custom_call.1} parent=5 // pred_fallthru
        _
    $region6: #{tpu_custom_call.1} parent=1 // loop_footer
      %s17 = sadd.s32 1, %s13
    $region7: #{tpu_custom_call.1} parent=1 // loop_footer_branch
      %12 = sbr.rel target = $region3
    $region8: #{tpu_custom_call.1} parent=1 // loop_exit
      _
    %781 = vsyncpa [#allocation3], 1
    %s782 = scalar_lea.sflag [#allocation3], 1
    %783 = vsyncpa %s782, 1
    %784 = vsyncpa [#allocation4], 1
    %s785 = scalar_lea.sflag [#allocation4], 1
    %786 = vsyncpa %s785, 1

</llo_original>
